<compile_context>
chip_gen: v7x
topology: tpu7x:2x2x1
jax: 0.10.0
libtpu: 0.0.40
codegen_flags: <defaults>
</compile_context>

<pallas_src>
import jax
import jax.numpy as jnp
from jax.experimental import pallas as pl
from jax.experimental.pallas import tpu as pltpu

_LANE = 128
_SUBLANE_32 = 8                    # sublane granularity for 32-bit dtypes
_BLOCK_BYTES = 4 * 1024 * 1024     # per-block byte cap for the VMEM path
_VMEM_LIMIT = 32 * 1024 * 1024     # scoped-VMEM request (safe on v5e/v6e/v7x)
_MIN_DMA_CHUNK = 1 * 1024 * 1024   # don't split HBM→HBM DMAs below ~1 MiB
_MAX_DMA_CHUNKS = 4


# ----------------------------------------------------------------------------
# Path 1: direct HBM→HBM DMA (no VMEM staging).
# ----------------------------------------------------------------------------
def _make_hbm_copy_kernel(bounds):
    """Kernel copying HBM→HBM in `len(bounds)` concurrent static chunks."""
    num_chunks = len(bounds)

    def kernel(x_hbm, o_hbm, sem):
        if num_chunks == 1:
            cp = pltpu.make_async_copy(x_hbm, o_hbm, sem.at[0])
            cp.start()
            cp.wait()
            return
        copies = []
        for c, (start, size) in enumerate(bounds):
            cp = pltpu.make_async_copy(
                x_hbm.at[pl.ds(start, size), :],
                o_hbm.at[pl.ds(start, size), :],
                sem.at[c],
            )
            cp.start()
            copies.append(cp)
        for cp in copies:
            cp.wait()

    return kernel


def _pallas_copy_hbm(x2d):
    """Materialized copy via chunked HBM→HBM DMA (operands stay in HBM)."""
    rows, cols = x2d.shape
    itemsize = jnp.dtype(x2d.dtype).itemsize
    total_bytes = rows * cols * itemsize

    num_chunks = int(max(1, min(_MAX_DMA_CHUNKS,
                                total_bytes // _MIN_DMA_CHUNK,
                                rows)))
    chunk_rows = -(-rows // num_chunks)  # ceil-div
    bounds = [(s, min(chunk_rows, rows - s)) for s in range(0, rows, chunk_rows)]

    return pl.pallas_call(
        _make_hbm_copy_kernel(bounds),
        out_shape=jax.ShapeDtypeStruct((rows, cols), x2d.dtype),
        in_specs=[pl.BlockSpec(memory_space=pl.ANY)],
        out_specs=pl.BlockSpec(memory_space=pl.ANY),
        scratch_shapes=[pltpu.SemaphoreType.DMA((len(bounds),))],
        cost_estimate=pl.CostEstimate(
            flops=0, transcendentals=0, bytes_accessed=2 * total_bytes),
    )(x2d)


# ----------------------------------------------------------------------------
# Path 2: VMEM-staged tiled copy.
# ----------------------------------------------------------------------------
def _copy_kernel(x_ref, o_ref):
    # Elementwise identity copy of the current tile.
    o_ref[...] = x_ref[...]


def _sublane_granularity(dtype):
    """8 for 32-bit, 16 for 16-bit, 32 for 8-bit dtypes (packed sublanes)."""
    itemsize = jnp.dtype(dtype).itemsize
    return max(_SUBLANE_32, (_SUBLANE_32 * 4) // max(itemsize, 1))


def _pick_tile_rows(rows, cols, itemsize, sub, block_budget_bytes=_BLOCK_BYTES):
    """Rows per block: sized by bytes (~4 MiB/block), sublane-granular."""
    row_bytes = max(cols * itemsize, 1)
    tb = block_budget_bytes // row_bytes
    tb = max(sub, (tb // sub) * sub)
    if tb >= rows:
        return rows  # single full block (full-dim block_shape is always legal)
    return tb


def _pallas_copy_vmem(x2d):
    """Materialized copy staged through VMEM with byte-sized lane-dense tiles."""
    B, F = x2d.shape
    dtype = x2d.dtype
    itemsize = jnp.dtype(dtype).itemsize
    sub = _sublane_granularity(dtype)
    n = B * F

    # Widen the lane-dense view: largest multiple-of-128 column count dividing n.
    cols = None
    for c in (4096, 2048, 1024, 512, 256, 128):
        if n % c == 0:
            cols = c
            break

    if cols is None:
        # Non-lane-dense fallback (tiny shapes): single/tiled blocks over (B, F)
        # with the full feature axis (full-dim last block dim is always legal).
        rows, cols = B, F
        xv = x2d
        reshaped = False
    else:
        rows = n // cols
        xv = x2d.reshape(rows, cols)
        reshaped = True

    tile_rows = _pick_tile_rows(rows, cols, itemsize, sub)
    grid = (pl.cdiv(rows, tile_rows),)

    out = pl.pallas_call(
        _copy_kernel,
        out_shape=jax.ShapeDtypeStruct((rows, cols), dtype),
        grid=grid,
        in_specs=[pl.BlockSpec((tile_rows, cols), lambda i: (i, 0))],
        out_specs=pl.BlockSpec((tile_rows, cols), lambda i: (i, 0)),
        compiler_params=pltpu.CompilerParams(
            dimension_semantics=("parallel",),
            vmem_limit_bytes=_VMEM_LIMIT,
        ),
        cost_estimate=pl.CostEstimate(
            flops=0, transcendentals=0, bytes_accessed=2 * n * itemsize),
    )(xv)

    return out.reshape(B, F) if reshaped else out


# ----------------------------------------------------------------------------
# Public API mirroring the PyTorch module.
# ----------------------------------------------------------------------------
def identity_encoder_forward(obs: jax.Array, detach: bool = False, *,
                             force_copy: bool = False,
                             via_vmem: bool = False) -> jax.Array:
    """Pallas equivalent of IdentityEncoder.forward(obs, detach).

    Default: no kernel launch — identity on immutable JAX arrays is free.
    force_copy=True: materialize a copy (via_vmem=False → direct HBM→HBM DMA;
    via_vmem=True → tiled VMEM-staged copy).
    """
    # `detach` is autograd-only in PyTorch; it has no forward-value effect.
    if not force_copy:
        return obs

    orig_shape = obs.shape
    x2d = obs if obs.ndim == 2 else obs.reshape(obs.shape[0], -1)

    out2d = _pallas_copy_vmem(x2d) if via_vmem else _pallas_copy_hbm(x2d)
    return out2d if obs.ndim == 2 else out2d.reshape(orig_shape)


class IdentityEncoderPallas:
    """Mirror of the PyTorch IdentityEncoder (no parameters)."""

    def __init__(self, obs_shape, feature_dim, num_layers, num_filters):
        assert len(obs_shape) == 1
        self.feature_dim = obs_shape[0]
        # No weights: the module defines no parameters.

    def forward(self, obs, detach=False, *, force_copy=False, via_vmem=False):
        return identity_encoder_forward(
            obs, detach, force_copy=force_copy, via_vmem=via_vmem)

    def __call__(self, obs, detach=False, **kw):
        return self.forward(obs, detach, **kw)

    def copy_conv_weights_from(self, source):
        pass  # no conv weights

    def log(self, L, step, log_freq):
        pass  # logging is a no-op


if __name__ == "__main__":
    key = jax.random.PRNGKey(0)
    k1, k2, k3 = jax.random.split(key, 3)

    def _check(out, ref):
        jax.block_until_ready(out)
        assert out.shape == ref.shape
        assert out.dtype == ref.dtype
        assert bool(jnp.all(out == ref))

    # Small shape matching the module's 1-D obs_shape: batch=2, feature_dim=32.
    batch, feature_dim = 2, 32
    obs_small = jax.random.normal(k1, (batch, feature_dim), dtype=jnp.float32)

    enc = IdentityEncoderPallas(
        obs_shape=(feature_dim,), feature_dim=feature_dim,
        num_layers=2, num_filters=32,
    )

    # 1) Default fast path: no kernel launch (identity, zero HBM traffic).
    _check(enc.forward(obs_small), obs_small)

    # 2) Forced copy, direct HBM→HBM DMA (single chunk at this tiny size).
    _check(enc.forward(obs_small, force_copy=True), obs_small)

    # 3) Forced copy, VMEM-staged fallback (F < 128 → single full block).
    _check(enc.forward(obs_small, force_copy=True, via_vmem=True), obs_small)

    # 4) Larger f32 input (2048, 1024) = 8 MiB:
    #    - HBM→HBM path splits into 4 concurrent 2 MiB DMA chunks
    #    - VMEM path views it as (512, 4096), 256-row (4 MiB) blocks, grid=(2,)
    obs_big = jax.random.normal(k2, (2048, 1024), dtype=jnp.float32)
    _check(identity_encoder_forward(obs_big, force_copy=True), obs_big)
    _check(identity_encoder_forward(obs_big, force_copy=True, via_vmem=True),
           obs_big)

    # 5) bf16 input exercises the dtype-aware (16-row) sublane granularity.
    obs_bf16 = jax.random.normal(k3, (64, 1024), dtype=jnp.float32).astype(
        jnp.bfloat16)
    _check(identity_encoder_forward(obs_bf16, force_copy=True), obs_bf16)
    _check(identity_encoder_forward(obs_bf16, force_copy=True, via_vmem=True),
           obs_bf16)

    print("KERNEL_OK")
</pallas_src>

<mosaic_0001>
module attributes {stable_mosaic.version = 11 : i64} {
  func.func @kernel(%arg0: memref<2x32xf32, #tpu.memory_space<any>>, %arg1: memref<2x32xf32, #tpu.memory_space<any>>, %arg2: memref<1x!tpu.dma_semaphore, #tpu.memory_space<semaphore_mem>>) attributes {dimension_semantics = [], scalar_prefetch = 0 : i64, scratch_operands = 1 : i64, tpu.core_type = #tpu.core_type<tc>} {
    %c0_i32 = arith.constant 0 : i32
    %0 = tpu.memref_slice %arg2[%c0_i32] : memref<1x!tpu.dma_semaphore, #tpu.memory_space<semaphore_mem>> -> memref<1x!tpu.dma_semaphore, #tpu.memory_space<semaphore_mem>>
    %1 = tpu.memref_squeeze %0 : memref<1x!tpu.dma_semaphore, #tpu.memory_space<semaphore_mem>> -> memref<!tpu.dma_semaphore, #tpu.memory_space<semaphore_mem>>
    tpu.enqueue_dma source(%arg0 : memref<2x32xf32, #tpu.memory_space<any>>) target(%arg1 : memref<2x32xf32, #tpu.memory_space<any>>) target_semaphore(%1 : memref<!tpu.dma_semaphore, #tpu.memory_space<semaphore_mem>>)
    %c0_i32_0 = arith.constant 0 : i32
    %2 = tpu.memref_slice %arg2[%c0_i32_0] : memref<1x!tpu.dma_semaphore, #tpu.memory_space<semaphore_mem>> -> memref<1x!tpu.dma_semaphore, #tpu.memory_space<semaphore_mem>>
    %3 = tpu.memref_squeeze %2 : memref<1x!tpu.dma_semaphore, #tpu.memory_space<semaphore_mem>> -> memref<!tpu.dma_semaphore, #tpu.memory_space<semaphore_mem>>
    tpu.wait_dma2 semaphore(%3 : memref<!tpu.dma_semaphore, #tpu.memory_space<semaphore_mem>>) src(%arg0 : memref<2x32xf32, #tpu.memory_space<any>>) dst(%arg1 : memref<2x32xf32, #tpu.memory_space<any>>)
    return
  }
}

</mosaic_0001>

<llo_original>
// kernel: tpu_custom_call.1
$region0: #{tpu_custom_call.1}
  #allocation0 [shape = 'u32[]', space=smem, size = 0x4, offset = 0x4, fixed_abs, tag = 'smem constant byte address 0x4 - core index']
  #allocation1 [shape = 'u32[144,128]{1,0:T(1,128)}', space=vmem, size = 0x12000, scoped, tag = 'internal scratch']
  #allocation2 [shape = 's32[1]{0}', space=sflag, size = 0x4, scoped, tag = 'scratch operand']
  #allocation3 [shape = 's32[]', space=sflag, size = 0x4, offset = 0, fixed_abs, tag = 'sflag constant byte address 0x0 - dummy sync flag']
  #allocation4 [shape = 'u32[0]{0}', space=smem, size = 0, offset = 0, fixed_abs, tag = 'smem constant byte address 0x0 - null']
  %s0 = inlined_call_operand.hbm [shape: f32[2,32], index: 0, kind: input, shape index: {}]
  %s1 = inlined_call_operand.hbm [shape: f32[2,32], index: 1, kind: output, shape index: {}]
  %s2 = sld [smem:[#allocation0]]
  $region2: #{tpu_custom_call.1} parent=0
    _
  %s4 = ssub.s32 1, %s2
  %s5 = scalar_select 0, %s4, %s2
  %s7 = sshll.u32 1, 14
  %s8 = sxor.u32 4294967295, %s7
  %s11 = sshll.u32 3, 24
  %s12 = sxor.u32 4294967295, %s11
  %s13 = sand.u32 0, %s12
  %s15 = sor.u32 %s13, 0
  %18 = dma.general %s0, 32, %s1, [#allocation2], [#allocation3], [#allocation4], %s15, 0
  %s19 = smul.u32 2, 1
  %s20 = sshll.u32 %s19, 4
  %21 = dma.done [#allocation2], %s20
  %22 = vsyncmov [#allocation2]
  %s23 = vpop.sfrf %22
  %p24 = scmp.eq.s32.totalorder %s23, 0
  %p25 = pneg %p24
  %27 = shalt.err (%p25)

</llo_original>
